<compile_context>
chip_gen: v5e
topology: v5e:2x2
jax: 0.10.0
libtpu: 0.0.40
codegen_flags: <defaults>
</compile_context>

<pallas_src>
import functools

import jax
import jax.numpy as jnp
from jax.experimental import pallas as pl
from jax.experimental.pallas import tpu as pltpu

_LANE = 1024        # lane-dense last dim (multiple of 128)
_BLOCK_ROWS = 1024  # (1024, 1024) f32 block = 4 MiB; in+out double-buffered = 16 MiB


def _meanact_kernel(x_ref, o_ref, *, minval, maxval):
    x = x_ref[...]
    # exp runs on the EUP; clip (max/min) on the VALU — both hidden under DMA.
    y = jnp.exp(x.astype(jnp.float32))
    y = jnp.clip(y, minval, maxval)
    o_ref[...] = y.astype(o_ref.dtype)


def _run_2d(x2d, minval, maxval):
    """Run the elementwise kernel over a lane-dense 2D slab."""
    rows, lane = x2d.shape
    block_rows = min(_BLOCK_ROWS, rows)  # either multiple of 8 or == full dim
    grid = (pl.cdiv(rows, block_rows),)
    n_elems = rows * lane
    itemsize = jnp.dtype(x2d.dtype).itemsize

    kernel = functools.partial(_meanact_kernel, minval=minval, maxval=maxval)
    return pl.pallas_call(
        kernel,
        out_shape=jax.ShapeDtypeStruct((rows, lane), x2d.dtype),
        grid_spec=pltpu.PrefetchScalarGridSpec(
            num_scalar_prefetch=0,
            grid=grid,
            in_specs=[pl.BlockSpec((block_rows, lane), lambda i: (i, 0))],
            out_specs=pl.BlockSpec((block_rows, lane), lambda i: (i, 0)),
        ),
        compiler_params=pltpu.CompilerParams(
            dimension_semantics=("parallel",),      # megacore sharding on v7x
            vmem_limit_bytes=48 * 1024 * 1024,      # fits 16 MiB buffering on v5e, < v7x 64 MiB
        ),
        cost_estimate=pl.CostEstimate(
            flops=2 * n_elems,
            transcendentals=n_elems,
            bytes_accessed=2 * n_elems * itemsize,
        ),
    )(x2d)


def mean_act(x, minval=1e-05, maxval=1000000.0):
    """Applies clamp(exp(x), minval, maxval) elementwise. Preserves shape/dtype."""
    orig_shape = x.shape
    orig_dtype = x.dtype
    total = x.size
    x_flat = jnp.reshape(x, (-1,))

    # Widest lane width (multiple of 128, up to _LANE) that divides the element count.
    lane = 0
    for cand in (_LANE, 512, 256, 128):
        if total % cand == 0:
            lane = cand
            break

    if lane:
        # No padding / extra HBM pass: kernel processes the whole array.
        out2d = _run_2d(jnp.reshape(x_flat, (total // lane, lane)), minval, maxval)
        return jnp.reshape(out2d, orig_shape)

    # General fallback: 128-aligned bulk through the kernel, tiny tail (<128
    # elements) in plain jnp.  Avoids copying/padding the whole array.
    bulk = (total // 128) * 128
    parts = []
    if bulk:
        out_bulk = _run_2d(jnp.reshape(x_flat[:bulk], (bulk // 128, 128)), minval, maxval)
        parts.append(jnp.reshape(out_bulk, (-1,)))
    tail = x_flat[bulk:]
    if tail.size:
        tail_out = jnp.clip(jnp.exp(tail.astype(jnp.float32)), minval, maxval)
        parts.append(tail_out.astype(orig_dtype))
    out_flat = parts[0] if len(parts) == 1 else jnp.concatenate(parts)
    return jnp.reshape(out_flat, orig_shape)


if __name__ == "__main__":
    key = jax.random.PRNGKey(0)
    # Small NCHW-like input consistent with how MeanAct is typically applied.
    x = jax.random.normal(key, (2, 4, 16, 16), dtype=jnp.float32) * 3.0

    out = mean_act(x)
    out = jax.block_until_ready(out)

    # Reference check in plain JAX.
    ref = jnp.clip(jnp.exp(x), 1e-05, 1000000.0)
    assert out.shape == x.shape and out.dtype == x.dtype
    assert jnp.allclose(out, ref, rtol=1e-6, atol=1e-6)

    # Also exercise the non-128-divisible fallback path on a tiny odd-sized input.
    x_odd = jax.random.normal(jax.random.PRNGKey(1), (3, 5, 7), dtype=jnp.float32)
    out_odd = jax.block_until_ready(mean_act(x_odd))
    ref_odd = jnp.clip(jnp.exp(x_odd), 1e-05, 1000000.0)
    assert jnp.allclose(out_odd, ref_odd, rtol=1e-6, atol=1e-6)

    print("KERNEL_OK")
</pallas_src>

<mosaic_0001>
module attributes {stable_mosaic.version = 11 : i64} {
  func.func @_meanact_kernel(%arg0: i32, %arg1: memref<2x1024xf32, #tpu.memory_space<vmem>>, %arg2: memref<2x1024xf32, #tpu.memory_space<vmem>>) attributes {dimension_semantics = [#tpu.dimension_semantics<parallel>], iteration_bounds = array<i64: 1>, scalar_prefetch = 0 : i64, scratch_operands = 0 : i64, tpu.core_type = #tpu.core_type<tc>, window_params = [{transform_indices = @transform_0, window_bounds = array<i64: 2, 1024>}, {transform_indices = @transform_1, window_bounds = array<i64: 2, 1024>}]} {
    %c0 = arith.constant 0 : index
    %c0_0 = arith.constant 0 : index
    %0 = vector.load %arg1[%c0, %c0_0] : memref<2x1024xf32, #tpu.memory_space<vmem>>, vector<2x1024xf32>
    %1 = math.exp %0 : vector<2x1024xf32>
    %cst = arith.constant 9.99999974E-6 : f32
    %cst_1 = arith.constant 1.000000e+06 : f32
    %2 = vector.broadcast %cst : f32 to vector<2x1024xf32>
    %3 = arith.maximumf %2, %1 : vector<2x1024xf32>
    %4 = vector.broadcast %cst_1 : f32 to vector<2x1024xf32>
    %5 = arith.minimumf %4, %3 : vector<2x1024xf32>
    %c0_2 = arith.constant 0 : index
    %c0_3 = arith.constant 0 : index
    %6 = vector.load %arg2[%c0_2, %c0_3] : memref<2x1024xf32, #tpu.memory_space<vmem>>, vector<2x1024xf32>
    tpu.vector_store %arg2[%c0_2, %c0_3], %5 {strides = array<i32>} : memref<2x1024xf32, #tpu.memory_space<vmem>>, vector<2x1024xf32>,
    return
  }
  func.func @transform_0(%arg0: i32) -> (i32, i32) {
    %c0_i32 = arith.constant 0 : i32
    %c0_i32_0 = arith.constant 0 : i32
    return %arg0, %c0_i32 : i32, i32
  }
  func.func @transform_1(%arg0: i32) -> (i32, i32) {
    %c0_i32 = arith.constant 0 : i32
    %c0_i32_0 = arith.constant 0 : i32
    return %arg0, %c0_i32 : i32, i32
  }
}

</mosaic_0001>

<llo_original>
// kernel: tpu_custom_call.1
$region0: #{tpu_custom_call.1}
  #allocation0 [shape = 'u32[]', space=smem, size = 0x4, offset = 0x4, fixed_abs, tag = 'smem constant byte address 0x4 - core index']
  #allocation1 [shape = 'u32[72,128]{1,0:T(1,128)}', space=vmem, size = 0x9000, scoped, tag = 'internal scratch']
  %s0 = inlined_call_operand.hbm [shape: f32[2,1024], index: 0, kind: input, shape index: {}]
  %s1 = inlined_call_operand.hbm [shape: f32[2,1024], index: 1, kind: output, shape index: {}]
  %s2 = sld [smem:[#allocation0]]
  $region18: #{tpu_custom_call.1} parent=0
    _
  %s4 = ssub.s32 1, %s2
  %s5 = scalar_select 0, %s4, %s2
  $region1: #{tpu_custom_call.1} parent=0
    #allocation2 [shape = 'u8[8192]{0}', space=vmem, size = 0x2000, scoped, tag = 'input window, operand 0, single buffered']
    #allocation3 [shape = 's32[1]{0}', space=sflag, size = 0x4, scoped, tag = 'scoped memory for tpu_custom_call.1']
    #allocation4 [shape = 's32[1]{0}', space=sflag, size = 0x4, scoped, tag = 'scoped memory for tpu_custom_call.1']
    #allocation5 [shape = 'u8[8192]{0}', space=vmem, size = 0x2000, scoped, tag = 'output window, operand 0, single buffered']
    %6 = vsyncpa [#allocation3], 0
    %7 = vsyncpa [#allocation4], 0
    // Predicated region
    $region2: #{tpu_custom_call.1} parent=1 // pred_check
      _
    $region3: #{tpu_custom_call.1} parent=1 // pred_check_branch
      %9 = sbr.rel (0) target = $region5
    $region4: #{tpu_custom_call.1} parent=1 // pred_region
      %11 = vsyncadd [#allocation3], 0
      %s13 = sshll.u32 %s0, 4
      %s14 = int_to_ptr.hbm [resolvable:$true] %s13
      %s15 = sshll.u32 [#allocation2], 4
      %s16 = int_to_ptr.vmem [resolvable:$true] %s15
      %18 = dma.hbm_to_vmem [thread:$0]  %s14, 256, %s16, [#allocation3]
    $region5: #{tpu_custom_call.1} parent=1 // pred_fallthru
      _
    // Predicated region
    $region6: #{tpu_custom_call.1} parent=1 // pred_check
      _
    $region7: #{tpu_custom_call.1} parent=1 // pred_check_branch
      %20 = sbr.rel (0) target = $region9
    $region8: #{tpu_custom_call.1} parent=1 // pred_region
      %22 = dma.done [#allocation3], 256
    $region9: #{tpu_custom_call.1} parent=1 // pred_fallthru
      _
    %v23 = vld [vmem:[#allocation2] sm:$0xff]
    %v24 = vld [vmem:[#allocation2 + $0x8] sm:$0xff]
    %v25 = vmul.f32 %v23, 1.442695
    %v26 = vpow.pop %v25
    %v27 = vmul.f32 %v24, 1.442695
    %v28 = vpow.pop %v27
    %v29 = vmax.f32 %v26, 1e-05
    %v30 = vmax.f32 %v28, 1e-05
    %v31 = vmin.f32 %v29, 1000000.0
    %v32 = vmin.f32 %v30, 1000000.0
    %33 = vst [vmem:[#allocation5] sm:$0xff] %v31
    %34 = vst [vmem:[#allocation5 + $0x8] sm:$0xff] %v32
    // Predicated region
    $region10: #{tpu_custom_call.1} parent=1 // pred_check
      _
    $region11: #{tpu_custom_call.1} parent=1 // pred_check_branch
      %36 = sbr.rel (0) target = $region13
    $region12: #{tpu_custom_call.1} parent=1 // pred_region
      %38 = vsyncadd [#allocation4], 0
      %s40 = sshll.u32 [#allocation5], 4
      %s41 = int_to_ptr.vmem [resolvable:$true] %s40
      %s42 = sshll.u32 %s1, 4
      %s43 = int_to_ptr.hbm [resolvable:$true] %s42
      %45 = dma.vmem_to_hbm [thread:$0]  %s41, 256, %s43, [#allocation4]
    $region13: #{tpu_custom_call.1} parent=1 // pred_fallthru
      _
    // Predicated region
    $region14: #{tpu_custom_call.1} parent=1 // pred_check
      _
    $region15: #{tpu_custom_call.1} parent=1 // pred_check_branch
      %47 = sbr.rel (0) target = $region17
    $region16: #{tpu_custom_call.1} parent=1 // pred_region
      %49 = dma.done [#allocation4], 256
    $region17: #{tpu_custom_call.1} parent=1 // pred_fallthru
      _
    %50 = vsyncpa [#allocation3], 1
    %51 = vsyncpa [#allocation4], 1

</llo_original>
